<compile_context>
chip_gen: v5e
topology: v5e:2x2
jax: 0.10.0
libtpu: 0.0.40
codegen_flags: <defaults>
</compile_context>

<pallas_src>
import functools

import jax
import jax.numpy as jnp
from jax.experimental import pallas as pl
from jax.experimental.pallas import tpu as pltpu


BN_EPS = 1e-5


# ---------------------------------------------------------------------------
# Kernel
# ---------------------------------------------------------------------------
def _neck_kernel(x_ref, w0_ref, b0_ref, w1_ref, b1_ref, o_ref, acc_ref, *,
                 pool_axis, last_chunk_valid):
    """Grid = (batch_tiles, spatial_chunks); the spatial axis is the reduction.

    x_ref  : (TN, C, THW)  [NCHW, pool_axis=2]  or  (TN, THW, C)  [NHWC, 1]
    w0_ref : (C, HID)   b0_ref : (1, HID)     (eval BN and 1/HW already folded)
    w1_ref : (HID, OUT) b1_ref : (1, OUT)
    o_ref  : (TN, 1, OUT)
    acc_ref: (TN, C) f32 scratch -- running spatial SUM across hw steps.
    """
    s = pl.program_id(1)
    last = pl.num_programs(1) - 1

    @pl.when(s == 0)
    def _():
        acc_ref[...] = jnp.zeros_like(acc_ref)

    x = x_ref[...]
    thw_block = x.shape[pool_axis]

    if last_chunk_valid == thw_block:
        # Spatial chunks tile HW exactly: plain f32 accumulation every step
        # (the bf16->f32 convert fuses into the reduce; no f32 tile copy).
        acc_ref[...] += jnp.sum(x, axis=pool_axis, dtype=jnp.float32)
    else:
        # HW % THW != 0: the last chunk reads past the array; mask the padding
        # so garbage never contaminates the spatial sum.
        @pl.when(s != last)
        def _():
            acc_ref[...] += jnp.sum(x, axis=pool_axis, dtype=jnp.float32)

        @pl.when(s == last)
        def _():
            idx = jax.lax.broadcasted_iota(jnp.int32, x.shape, pool_axis)
            xm = jnp.where(idx < last_chunk_valid, x, jnp.zeros_like(x))
            acc_ref[...] += jnp.sum(xm, axis=pool_axis, dtype=jnp.float32)

    @pl.when(s == last)
    def _():
        # fc0 (+ folded eval BN + folded 1/HW) -> ReLU
        # -> Dropout (identity in eval) -> fc1 -> ReLU.
        # Weights go to the MXU in their native dtype; accumulation is f32.
        # TODO(synk): nn.Dropout training-mode stochastic masking not emulated.
        # TODO(synk): BatchNorm1d training-mode batch statistics not emulated;
        # eval-mode running stats are folded into fc0.
        pooled = acc_ref[...]                                  # spatial SUM (TN, C)
        h = jnp.dot(pooled.astype(w0_ref.dtype), w0_ref[...],
                    preferred_element_type=jnp.float32)
        h = jnp.maximum(h + b0_ref[...], 0.0)
        y = jnp.dot(h.astype(w1_ref.dtype), w1_ref[...],
                    preferred_element_type=jnp.float32)
        y = jnp.maximum(y + b1_ref[...], 0.0)
        o_ref[...] = y[:, None, :].astype(o_ref.dtype)


# ---------------------------------------------------------------------------
# Sizing helpers
# ---------------------------------------------------------------------------
def _vmem_capacity_bytes():
    try:
        return int(pltpu.get_tpu_info().vmem_capacity_bytes)
    except Exception:
        return 64 << 20            # conservative fallback (v7x-sized)


def _pick_tiles(n, c, hw, x_itemsize, weight_bytes, out_ch, *,
                vmem_budget, target_dma_bytes):
    """Choose (TN, THW): batch tile and spatial chunk.

    Footprint model: 2 * x_tile (double-buffered input)
      + weight_bytes (single-buffered resident weights, pl.Buffered(1))
      + TN*C*4 (f32 pooling accumulator) + 2*TN*OUT*4 (output tile) + slack.
    """
    slack = 2 << 20

    def fits(tn, thw):
        x_tile = tn * c * thw * x_itemsize
        extra = weight_bytes + tn * c * 4 + 2 * tn * out_ch * 4 + slack
        return 2 * x_tile + extra <= vmem_budget

    per_sample = c * hw * x_itemsize
    bytes_per_pos = c * x_itemsize

    # Case A: whole spatial extent per step; tile the batch only.
    tn = max(1, min(n, -(-target_dma_bytes // per_sample)))
    while tn > 1 and not fits(tn, hw):
        tn = max(1, tn // 2)
    if fits(tn, hw):
        n_batch_steps = -(-n // tn)
        x_tile = tn * per_sample
        # Small-N / big-feature-map regime: too few grid steps to pipeline and
        # an oversized per-step DMA -> split the spatial axis as well.
        if n_batch_steps <= 2 and x_tile > 2 * target_dma_bytes and hw > 256:
            thw = max(1, target_dma_bytes // (tn * bytes_per_pos))
            thw = max(128, (thw // 128) * 128)          # lane-aligned chunks
            if thw < hw:
                return tn, thw
        return tn, hw

    # Case B: a single sample does not fit the budget -> TN=1 + spatial tiling.
    thw_cap = max(1, (vmem_budget
                      - (weight_bytes + c * 4 + 2 * out_ch * 4 + slack))
                  // (2 * bytes_per_pos))
    thw = min(thw_cap, max(1, target_dma_bytes // bytes_per_pos), hw)
    thw = max(128, (thw // 128) * 128)
    if thw >= hw:
        thw = hw
    return 1, thw


# ---------------------------------------------------------------------------
# Wrapper
# ---------------------------------------------------------------------------
def nonlinear_neck_v0(xs, params, *, data_format="NCHW", out_dtype=jnp.float32,
                      target_dma_bytes=16 << 20):
    """xs: [x] with x (N, C, H, W) (NCHW) or (N, H, W, C) (NHWC), any float dtype.

    params: from fold_bn_into_fc0(raw, spatial_size=H*W) -- w0:(C,HID),
    b0:(1,HID), w1:(HID,OUT), b1:(1,OUT) with eval BN and 1/HW folded into fc0.
    Returns [y] with y: (N, OUT) in out_dtype.
    """
    assert len(xs) == 1
    x = xs[0]

    if data_format == "NCHW":
        n, c, h, w = x.shape
        hw = h * w
        x3 = x.reshape(n, c, hw)                 # free reshape, no cast/transpose
        pool_axis = 2

        def x_block(tn, thw): return (tn, c, thw)
        def x_index(i, s): return (i, 0, s)
    elif data_format == "NHWC":
        n, h, w, c = x.shape
        hw = h * w
        x3 = x.reshape(n, hw, c)                 # channels-last: C lane-dense
        pool_axis = 1

        def x_block(tn, thw): return (tn, thw, c)
        def x_index(i, s): return (i, s, 0)
    else:
        raise ValueError(f"unknown data_format {data_format}")

    w0, b0, w1, b1 = params["w0"], params["b0"], params["w1"], params["b1"]
    out_ch = w1.shape[1]
    weight_bytes = sum(int(a.size) * a.dtype.itemsize for a in (w0, b0, w1, b1))

    vmem_cap = _vmem_capacity_bytes()
    vmem_budget = max(16 << 20, min(vmem_cap - (16 << 20), (vmem_cap * 4) // 5))

    x_itemsize = x3.dtype.itemsize
    tn, thw = _pick_tiles(n, c, hw, x_itemsize, weight_bytes, out_ch,
                          vmem_budget=vmem_budget,
                          target_dma_bytes=target_dma_bytes)
    n_hw_steps = pl.cdiv(hw, thw)
    grid = (pl.cdiv(n, tn), n_hw_steps)
    last_chunk_valid = hw - (n_hw_steps - 1) * thw

    x_tile_bytes = tn * c * thw * x_itemsize
    needed = (2 * x_tile_bytes + weight_bytes + tn * c * 4
              + 2 * tn * out_ch * 4 + (2 << 20))
    vmem_limit = int(min(vmem_cap - (8 << 20), max(needed, 16 << 20)))

    kernel = functools.partial(_neck_kernel, pool_axis=pool_axis,
                               last_chunk_valid=last_chunk_valid)

    def const_spec(shape):
        # Constant index_map => no re-DMA across the grid; single-buffer it.
        return pl.BlockSpec(shape, lambda i, s: (0, 0),
                            pipeline_mode=pl.Buffered(1))

    y3 = pl.pallas_call(
        kernel,
        out_shape=jax.ShapeDtypeStruct((n, 1, out_ch), out_dtype),
        grid=grid,
        in_specs=[
            pl.BlockSpec(x_block(tn, thw), x_index),     # streamed x tiles
            const_spec(w0.shape),                        # resident weights
            const_spec(b0.shape),
            const_spec(w1.shape),
            const_spec(b1.shape),
        ],
        out_specs=pl.BlockSpec((tn, 1, out_ch), lambda i, s: (i, 0, 0)),
        scratch_shapes=[pltpu.VMEM((tn, c), jnp.float32)],
        compiler_params=pltpu.CompilerParams(
            dimension_semantics=("parallel", "arbitrary"),  # megacore on batch
            vmem_limit_bytes=vmem_limit,
        ),
    )(x3, w0, b0, w1, b1)
    return [y3.reshape(n, out_ch)]


# ---------------------------------------------------------------------------
# Params: init (mirrors _init_weights(init_linear='normal')) + BN/1-HW folding
# ---------------------------------------------------------------------------
def init_raw_params(key, in_channels, hid_channels, out_channels, std=0.01):
    k0, k1 = jax.random.split(key)
    # PyTorch Linear weight is (out, in); store transposed (in, out) for the kernel.
    w0 = (std * jax.random.normal(k0, (hid_channels, in_channels), jnp.float32)).T
    b0 = jnp.zeros((1, hid_channels), jnp.float32)
    w1 = (std * jax.random.normal(k1, (out_channels, hid_channels), jnp.float32)).T
    b1 = jnp.zeros((1, out_channels), jnp.float32)
    # BatchNorm1d(affine=False) running stats at init.
    bn_mean = jnp.zeros((1, hid_channels), jnp.float32)
    bn_var = jnp.ones((1, hid_channels), jnp.float32)
    return {"w0": w0, "b0": b0, "bn_mean": bn_mean, "bn_var": bn_var,
            "w1": w1, "b1": b1}


def fold_bn_into_fc0(raw, spatial_size, eps=BN_EPS, param_dtype=None):
    """One-time host-side fold of eval-mode BatchNorm1d (affine=False) and the
    1/(H*W) average-pool scale into fc0.

    h = (sum_hw(x)/HW) @ w0 + b0;  bn(h) = (h - mu) * rsqrt(var+eps)
      = sum_hw(x) @ (w0 * scale / HW) + (b0 - mu) * scale
    Pass param_dtype=jnp.bfloat16 to store folded weights in bf16 (halves
    resident-weight VMEM; the MXU consumes bf16 natively with f32 accumulation).
    """
    scale = jax.lax.rsqrt(raw["bn_var"] + eps)              # (1, HID)
    inv_hw = 1.0 / float(spatial_size)
    w0 = raw["w0"] * (scale * inv_hw)                        # column-scaled (C, HID)
    b0 = (raw["b0"] - raw["bn_mean"]) * scale                # (1, HID)
    w1, b1 = raw["w1"], raw["b1"]
    if param_dtype is not None:
        w0, b0, w1, b1 = (a.astype(param_dtype) for a in (w0, b0, w1, b1))
    return {"w0": w0, "b0": b0, "w1": w1, "b1": b1}


# ---------------------------------------------------------------------------
# Pure-JAX reference (un-folded BN path) and smoke test
# ---------------------------------------------------------------------------
def _reference(x_nchw, raw):
    n, c, h, w = x_nchw.shape
    pooled = jnp.mean(x_nchw.astype(jnp.float32).reshape(n, c, h * w), axis=-1)
    h0 = pooled @ raw["w0"] + raw["b0"]
    h0 = (h0 - raw["bn_mean"]) * jax.lax.rsqrt(raw["bn_var"] + BN_EPS)
    h0 = jnp.maximum(h0, 0.0)
    y = h0 @ raw["w1"] + raw["b1"]
    return jnp.maximum(y, 0.0)


if __name__ == "__main__":
    key = jax.random.PRNGKey(0)
    k_x, k_p = jax.random.split(key)

    N, C, H, W = 2, 4, 16, 16          # in_channels = 4
    HID, OUT = 32, 8

    x = jax.random.normal(k_x, (N, C, H, W), jnp.float32)
    raw_params = init_raw_params(k_p, C, HID, OUT)
    params = fold_bn_into_fc0(raw_params, spatial_size=H * W)

    out_list = nonlinear_neck_v0([x], params)
    y = jax.block_until_ready(out_list[0])

    y_ref = _reference(x, raw_params)
    assert y.shape == (N, OUT)
    assert jnp.allclose(y, y_ref, atol=1e-5, rtol=1e-4), "mismatch vs reference"

    print("KERNEL_OK")
</pallas_src>

<mosaic_0001>
module attributes {stable_mosaic.version = 11 : i64} {
  func.func @_neck_kernel(%arg0: i32, %arg1: i32, %arg2: memref<2x4x256xf32, #tpu.memory_space<vmem>>, %arg3: memref<4x32xf32, #tpu.memory_space<vmem>>, %arg4: memref<1x32xf32, #tpu.memory_space<vmem>>, %arg5: memref<32x8xf32, #tpu.memory_space<vmem>>, %arg6: memref<1x8xf32, #tpu.memory_space<vmem>>, %arg7: memref<2x1x8xf32, #tpu.memory_space<vmem>>, %arg8: memref<2x4xf32, #tpu.memory_space<vmem>>) attributes {dimension_semantics = [#tpu.dimension_semantics<parallel>, #tpu.dimension_semantics<arbitrary>], iteration_bounds = array<i64: 1, 1>, scalar_prefetch = 0 : i64, scratch_operands = 1 : i64, tpu.core_type = #tpu.core_type<tc>, window_params = [{transform_indices = @transform_0, window_bounds = array<i64: 2, 4, 256>}, {pipeline_mode = #tpu.pipeline_mode<synchronous>, transform_indices = @transform_1, window_bounds = array<i64: 4, 32>}, {pipeline_mode = #tpu.pipeline_mode<synchronous>, transform_indices = @transform_2, window_bounds = array<i64: 1, 32>}, {pipeline_mode = #tpu.pipeline_mode<synchronous>, transform_indices = @transform_3, window_bounds = array<i64: 32, 8>}, {pipeline_mode = #tpu.pipeline_mode<synchronous>, transform_indices = @transform_4, window_bounds = array<i64: 1, 8>}, {transform_indices = @transform_5, window_bounds = array<i64: 2, 1, 8>}]} {
    %c0_i32 = arith.constant 0 : i32
    %0 = arith.cmpi eq, %arg1, %c0_i32 : i32
    %1 = arith.extui %0 : i1 to i32
    %c0_i32_0 = arith.constant 0 : i32
    %2 = arith.cmpi ne, %1, %c0_i32_0 : i32
    scf.if %2 {
      %cst_9 = arith.constant 0.000000e+00 : f32
      %11 = vector.broadcast %cst_9 : f32 to vector<2x4xf32>
      %c0_10 = arith.constant 0 : index
      %c0_11 = arith.constant 0 : index
      %12 = vector.load %arg8[%c0_10, %c0_11] : memref<2x4xf32, #tpu.memory_space<vmem>>, vector<2x4xf32>
      tpu.vector_store %arg8[%c0_10, %c0_11], %11 {strides = array<i32>} : memref<2x4xf32, #tpu.memory_space<vmem>>, vector<2x4xf32>,
    } else {
    }
    %c0 = arith.constant 0 : index
    %c0_1 = arith.constant 0 : index
    %c0_2 = arith.constant 0 : index
    %3 = vector.load %arg2[%c0, %c0_1, %c0_2] : memref<2x4x256xf32, #tpu.memory_space<vmem>>, vector<2x4x256xf32>
    %c0_3 = arith.constant 0 : index
    %c0_4 = arith.constant 0 : index
    %4 = vector.load %arg8[%c0_3, %c0_4] : memref<2x4xf32, #tpu.memory_space<vmem>>, vector<2x4xf32>
    %cst = arith.constant dense<0.000000e+00> : vector<2x4xf32>
    %5 = vector.multi_reduction <add>, %3, %cst [2] : vector<2x4x256xf32> to vector<2x4xf32>
    %6 = arith.addf %4, %5 : vector<2x4xf32>
    %c0_5 = arith.constant 0 : index
    %c0_6 = arith.constant 0 : index
    %7 = vector.load %arg8[%c0_5, %c0_6] : memref<2x4xf32, #tpu.memory_space<vmem>>, vector<2x4xf32>
    tpu.vector_store %arg8[%c0_5, %c0_6], %6 {strides = array<i32>} : memref<2x4xf32, #tpu.memory_space<vmem>>, vector<2x4xf32>,
    %c0_i32_7 = arith.constant 0 : i32
    %8 = arith.cmpi eq, %arg1, %c0_i32_7 : i32
    %9 = arith.extui %8 : i1 to i32
    %c0_i32_8 = arith.constant 0 : i32
    %10 = arith.cmpi ne, %9, %c0_i32_8 : i32
    scf.if %10 {
      %c0_9 = arith.constant 0 : index
      %c0_10 = arith.constant 0 : index
      %11 = vector.load %arg8[%c0_9, %c0_10] : memref<2x4xf32, #tpu.memory_space<vmem>>, vector<2x4xf32>
      %c0_11 = arith.constant 0 : index
      %c0_12 = arith.constant 0 : index
      %12 = vector.load %arg3[%c0_11, %c0_12] : memref<4x32xf32, #tpu.memory_space<vmem>>, vector<4x32xf32>
      %cst_13 = arith.constant dense<0.000000e+00> : vector<2x32xf32>
      %13 = tpu.matmul %11, %12, %cst_13 {dimension_numbers = #tpu.dot_dimension_numbers<[1], [0], [0], [1], [0, 0, 1, 1], [], []>} : vector<2x4xf32>, vector<4x32xf32>, vector<2x32xf32> -> vector<2x32xf32>
      %c0_14 = arith.constant 0 : index
      %c0_15 = arith.constant 0 : index
      %14 = vector.load %arg4[%c0_14, %c0_15] : memref<1x32xf32, #tpu.memory_space<vmem>>, vector<1x32xf32>
      %15 = vector.broadcast %14 : vector<1x32xf32> to vector<2x32xf32>
      %16 = arith.addf %13, %15 : vector<2x32xf32>
      %cst_16 = arith.constant 0.000000e+00 : f32
      %17 = vector.broadcast %cst_16 : f32 to vector<2x32xf32>
      %18 = arith.maximumf %16, %17 : vector<2x32xf32>
      %c0_17 = arith.constant 0 : index
      %c0_18 = arith.constant 0 : index
      %19 = vector.load %arg5[%c0_17, %c0_18] : memref<32x8xf32, #tpu.memory_space<vmem>>, vector<32x8xf32>
      %cst_19 = arith.constant dense<0.000000e+00> : vector<2x8xf32>
      %20 = tpu.matmul %18, %19, %cst_19 {dimension_numbers = #tpu.dot_dimension_numbers<[1], [0], [0], [1], [0, 0, 1, 1], [], []>} : vector<2x32xf32>, vector<32x8xf32>, vector<2x8xf32> -> vector<2x8xf32>
      %c0_20 = arith.constant 0 : index
      %c0_21 = arith.constant 0 : index
      %21 = vector.load %arg6[%c0_20, %c0_21] : memref<1x8xf32, #tpu.memory_space<vmem>>, vector<1x8xf32>
      %22 = vector.broadcast %21 : vector<1x8xf32> to vector<2x8xf32>
      %23 = arith.addf %20, %22 : vector<2x8xf32>
      %cst_22 = arith.constant 0.000000e+00 : f32
      %24 = vector.broadcast %cst_22 : f32 to vector<2x8xf32>
      %25 = arith.maximumf %23, %24 : vector<2x8xf32>
      %26 = vector.shape_cast %25 : vector<2x8xf32> to vector<2x1x8xf32>
      %c0_23 = arith.constant 0 : index
      %c0_24 = arith.constant 0 : index
      %c0_25 = arith.constant 0 : index
      %27 = vector.load %arg7[%c0_23, %c0_24, %c0_25] : memref<2x1x8xf32, #tpu.memory_space<vmem>>, vector<2x1x8xf32>
      tpu.vector_store %arg7[%c0_23, %c0_24, %c0_25], %26 {strides = array<i32>} : memref<2x1x8xf32, #tpu.memory_space<vmem>>, vector<2x1x8xf32>,
    } else {
    }
    return
  }
  func.func @transform_0(%arg0: i32, %arg1: i32) -> (i32, i32, i32) {
    %c0_i32 = arith.constant 0 : i32
    %c0_i32_0 = arith.constant 0 : i32
    return %arg0, %c0_i32, %arg1 : i32, i32, i32
  }
  func.func @transform_1(%arg0: i32, %arg1: i32) -> (i32, i32) {
    %c0_i32 = arith.constant 0 : i32
    %c0_i32_0 = arith.constant 0 : i32
    %c0_i32_1 = arith.constant 0 : i32
    return %c0_i32, %c0_i32_0 : i32, i32
  }
  func.func @transform_2(%arg0: i32, %arg1: i32) -> (i32, i32) {
    %c0_i32 = arith.constant 0 : i32
    %c0_i32_0 = arith.constant 0 : i32
    %c0_i32_1 = arith.constant 0 : i32
    return %c0_i32, %c0_i32_0 : i32, i32
  }
  func.func @transform_3(%arg0: i32, %arg1: i32) -> (i32, i32) {
    %c0_i32 = arith.constant 0 : i32
    %c0_i32_0 = arith.constant 0 : i32
    %c0_i32_1 = arith.constant 0 : i32
    return %c0_i32, %c0_i32_0 : i32, i32
  }
  func.func @transform_4(%arg0: i32, %arg1: i32) -> (i32, i32) {
    %c0_i32 = arith.constant 0 : i32
    %c0_i32_0 = arith.constant 0 : i32
    %c0_i32_1 = arith.constant 0 : i32
    return %c0_i32, %c0_i32_0 : i32, i32
  }
  func.func @transform_5(%arg0: i32, %arg1: i32) -> (i32, i32, i32) {
    %c0_i32 = arith.constant 0 : i32
    %c0_i32_0 = arith.constant 0 : i32
    %c0_i32_1 = arith.constant 0 : i32
    return %arg0, %c0_i32, %c0_i32_0 : i32, i32, i32
  }
}

</mosaic_0001>

<llo_original>
// kernel: tpu_custom_call.1
$region0: #{tpu_custom_call.1}
  #allocation0 [shape = 'u32[]', space=smem, size = 0x4, offset = 0x4, fixed_abs, tag = 'smem constant byte address 0x4 - core index']
  #allocation1 [shape = 'u32[72,128]{1,0:T(1,128)}', space=vmem, size = 0x9000, scoped, tag = 'internal scratch']
  #allocation2 [shape = 'f32[2,4]{1,0:T(2,128)}', space=vmem, size = 0x400, scoped, tag = 'scratch operand']
  %s0 = inlined_call_operand.vmem [shape: f32[2,4,256], index: 0, kind: input, shape index: {}]
  %s1 = inlined_call_operand.vmem [shape: f32[4,32], index: 1, kind: input, shape index: {}]
  %s2 = inlined_call_operand.vmem [shape: f32[1,32], index: 2, kind: input, shape index: {}]
  %s3 = inlined_call_operand.vmem [shape: f32[32,8], index: 3, kind: input, shape index: {}]
  %s4 = inlined_call_operand.vmem [shape: f32[1,8], index: 4, kind: input, shape index: {}]
  %s5 = inlined_call_operand.hbm [shape: f32[2,1,8], index: 5, kind: output, shape index: {}]
  %s6 = sld [smem:[#allocation0]]
  $region38: #{tpu_custom_call.1} parent=0
    _
  %s8 = ssub.s32 1, %s6
  %s9 = scalar_select 0, %s8, %s6
  $region1: #{tpu_custom_call.1} parent=0
    #allocation3 [shape = 'u8[1024]{0}', space=vmem, size = 0x400, scoped, tag = 'output window, operand 0, single buffered']
    #allocation4 [shape = 's32[1]{0}', space=sflag, size = 0x4, scoped, tag = 'scoped memory for tpu_custom_call.1']
    %10 = vsyncpa [#allocation4], 0
    // Predicated region
    $region2: #{tpu_custom_call.1} parent=1 // pred_check
      _
    $region3: #{tpu_custom_call.1} parent=1 // pred_check_branch
      %12 = sbr.rel (0) target = $region5
    $region4: #{tpu_custom_call.1} parent=1 // pred_region
      _
    $region5: #{tpu_custom_call.1} parent=1 // pred_fallthru
      _
    // Predicated region
    $region6: #{tpu_custom_call.1} parent=1 // pred_check
      _
    $region7: #{tpu_custom_call.1} parent=1 // pred_check_branch
      %14 = sbr.rel (0) target = $region9
    $region8: #{tpu_custom_call.1} parent=1 // pred_region
      _
    $region9: #{tpu_custom_call.1} parent=1 // pred_fallthru
      _
    // Predicated region
    $region10: #{tpu_custom_call.1} parent=1 // pred_check
      _
    $region11: #{tpu_custom_call.1} parent=1 // pred_check_branch
      %16 = sbr.rel (0) target = $region13
    $region12: #{tpu_custom_call.1} parent=1 // pred_region
      _
    $region13: #{tpu_custom_call.1} parent=1 // pred_fallthru
      _
    // Predicated region
    $region14: #{tpu_custom_call.1} parent=1 // pred_check
      _
    $region15: #{tpu_custom_call.1} parent=1 // pred_check_branch
      %18 = sbr.rel (0) target = $region17
    $region16: #{tpu_custom_call.1} parent=1 // pred_region
      _
    $region17: #{tpu_custom_call.1} parent=1 // pred_fallthru
      _
    // Predicated region
    $region18: #{tpu_custom_call.1} parent=1 // pred_check
      _
    $region19: #{tpu_custom_call.1} parent=1 // pred_check_branch
      %20 = sbr.rel (0) target = $region21
    $region20: #{tpu_custom_call.1} parent=1 // pred_region
      _
    $region21: #{tpu_custom_call.1} parent=1 // pred_fallthru
      _
    %p21 = scmp.eq.s32.totalorder 0, 0
    // Predicated region
    $region22: #{tpu_custom_call.1} parent=1 // pred_check
      %p22 = pneg %p21
    $region23: #{tpu_custom_call.1} parent=1 // pred_check_branch
      %24 = sbr.rel (%p22) target = $region25
    $region24: #{tpu_custom_call.1} parent=1 // pred_region
      %vm25 = vcmask 25600
      %26 = vst.msk [vmem:[#allocation2] sm:$0x3] %vm25, 0.0
    $region25: #{tpu_custom_call.1} parent=1 // pred_fallthru
      _
    %v27 = vld [vmem:[%s0] sm:$0xff]
    %v28 = vld [vmem:[%s0 + $0x8] sm:$0xff]
    %v29 = vld [vmem:[#allocation2] sm:$0x3]
    %32 = vst [vmem:[#allocation1] ss:$2 sm:$0xff] %v27
    %v33 = vld.sshfl [vmem:[#allocation1] sm:$0xff pattern:$0x75316420]
    %v34 = vld.sshfl [vmem:[#allocation1 + $0x8] sm:$0xff pattern:$0x75316420]
    %s35 = scalar_lea.vmem [#allocation1], 16
    %36 = vst [vmem:[%s35] ss:$2 sm:$0xff] %v28
    %v37 = vld.sshfl [vmem:[#allocation1 + $0x10] sm:$0xff pattern:$0x75316420]
    %v38 = vld.sshfl [vmem:[#allocation1 + $0x18] sm:$0xff pattern:$0x75316420]
    %vm43 = vcmask 1043456
    %v44 = vsel %vm43, %v33, 0.0
    %v45 = vsel %vm43, %v34, 0.0
    %v46 = vadd.f32 %v44, %v45
    %47 = vadd.xlane.f32.xlu0 %v46
    %v48 = vpop.xlane.xlu0 %47
    %v49 = vsel %vm43, %v37, 0.0
    %v50 = vsel %vm43, %v38, 0.0
    %v51 = vadd.f32 %v49, %v50
    %52 = vadd.xlane.f32.xlu0 %v51
    %v53 = vpop.xlane.xlu0 %52
    %v56 = vlaneseq
    %v57 = vand.u32 %v56, 127
    %v58 = vperm.slane %v48, %v57
    %v59 = vperm.slane %v53, %v57
    %vm60 = vcmask 1041409
    %v61 = vsel %vm60, %v59, %v58
    %v63 = vadd.f32 %v29, %v61
    %vm64 = vcmask 25600
    %65 = vst.msk [vmem:[#allocation2] sm:$0x3] %vm64, %v63
    // Predicated region
    $region26: #{tpu_custom_call.1} parent=1 // pred_check
      %p66 = pneg %p21
    $region27: #{tpu_custom_call.1} parent=1 // pred_check_branch
      %68 = sbr.rel (%p66) target = $region29
    $region28: #{tpu_custom_call.1} parent=1 // pred_region
      %v69 = vld [vmem:[#allocation2] sm:$0x3]
      %v70 = vld [vmem:[%s1] sm:$0xf]
      %v71 = vld [vmem:[%s2] sm:$0x1]
      %v73 = vperm.slane %v71, 0
      %vm75 = vcmask 31744
      %v77 = vsel %vm75, %v69, 0
      %v80 = vsel %vm43, %v70, 0
      %82 = vmatpush.msra.mxu0 0.0
      %83 = vmatpush.msra.mxu0 0.0
      %84 = vmatpush.msra.mxu0 0.0
      %85 = vmatpush.msra.mxu0 0.0
      %86 = vmatpush.msra.mxu0 0.0
      %87 = vmatpush.msra.mxu0 0.0
      %88 = vmatpush.msra.mxu0 0.0
      %89 = vmatpush.msra.mxu0 0.0
      %90 = vmatpush.msra.mxu0 0.0
      %91 = vmatpush.msra.mxu0 0.0
      %92 = vmatpush.msra.mxu0 0.0
      %93 = vmatpush.msra.mxu0 0.0
      %94 = vmatpush.msra.mxu0 0.0
      %95 = vmatpush.msra.mxu0 0.0
      %96 = vmatpush.msra.mxu0 0.0
      %97 = vmatpush.msra.mxu0 %v80
      %98 = vmatmul.f32.gmra.mxu0 %v77
      %v99 = vpop.f32.mrf.mxu0
      %v100 = vadd.f32 %v73, %v99
      %101 = vdwg.mxu0
      %v102 = vmax.f32 %v100, 0.0
      %v103 = vld [vmem:[%s3] sm:$0xff]
      %v104 = vld [vmem:[%s3 + $0x8] sm:$0xff]
      %v105 = vld [vmem:[%s3 + $0x10] sm:$0xff]
      %v106 = vld [vmem:[%s3 + $0x18] sm:$0xff]
      %v107 = vld [vmem:[%s4] sm:$0x1]
      %v109 = vperm.slane %v107, 0
      %vm111 = vcmask 261120
      %v113 = vsel %vm111, %v102, 0
      %115 = vmatpush.msra.mxu0 0.0
      %116 = vmatpush.msra.mxu0 0.0
      %117 = vmatpush.msra.mxu0 0.0
      %118 = vmatpush.msra.mxu0 0.0
      %119 = vmatpush.msra.mxu0 0.0
      %120 = vmatpush.msra.mxu0 0.0
      %121 = vmatpush.msra.mxu0 0.0
      %122 = vmatpush.msra.mxu0 0.0
      %123 = vmatpush.msra.mxu0 0.0
      %124 = vmatpush.msra.mxu0 0.0
      %125 = vmatpush.msra.mxu0 0.0
      %126 = vmatpush.msra.mxu0 0.0
      %127 = vmatpush.msra.mxu0 %v106
      %128 = vmatpush.msra.mxu0 %v105
      %129 = vmatpush.msra.mxu0 %v104
      %130 = vmatpush.msra.mxu0 %v103
      %131 = vmatmul.f32.gmra.mxu0 %v113
      %v132 = vpop.f32.mrf.mxu0
      %v133 = vadd.f32 %v109, %v132
      %134 = vdwg.mxu0
      %v135 = vmax.f32 %v133, 0.0
      %v137 = vrot.slane %v135, 1
      %vm139 = vcmask 57344
      %140 = vst.msk [vmem:[#allocation3] sm:$0x1] %vm139, %v135
      %141 = vst.msk [vmem:[#allocation3 + $0x1] sm:$0x1] %vm139, %v137
    $region29: #{tpu_custom_call.1} parent=1 // pred_fallthru
      _
    // Predicated region
    $region30: #{tpu_custom_call.1} parent=1 // pred_check
      _
    $region31: #{tpu_custom_call.1} parent=1 // pred_check_branch
      %143 = sbr.rel (0) target = $region33
    $region32: #{tpu_custom_call.1} parent=1 // pred_region
      %145 = vsyncadd [#allocation4], 0
      %s146 = sshll.u32 [#allocation3], 4
      %s147 = int_to_ptr.vmem [resolvable:$true] %s146
      %s148 = sshll.u32 %s5, 4
      %s149 = int_to_ptr.hbm [resolvable:$true] %s148
      %154 = dma.vmem_to_hbm [thread:$0]  %s147, 32, %s149, [#allocation4], 16, 16, 1
    $region33: #{tpu_custom_call.1} parent=1 // pred_fallthru
      _
    // Predicated region
    $region34: #{tpu_custom_call.1} parent=1 // pred_check
      _
    $region35: #{tpu_custom_call.1} parent=1 // pred_check_branch
      %156 = sbr.rel (0) target = $region37
    $region36: #{tpu_custom_call.1} parent=1 // pred_region
      %158 = dma.done [#allocation4], 32
    $region37: #{tpu_custom_call.1} parent=1 // pred_fallthru
      _
    %159 = vsyncpa [#allocation4], 1

</llo_original>
